<compile_context>
chip_gen: v7x
topology: tpu7x:2x2x1
jax: 0.10.0
libtpu: 0.0.40
codegen_flags: <defaults>
</compile_context>

<pallas_src>
import jax
import jax.numpy as jnp
from jax.experimental import pallas as pl
from jax.experimental.pallas import tpu as pltpu

LANE = 128      # vreg lane width: feature dims padded to multiples of this
SUBLANE = 8     # f32 sublane height: batch tiles padded to multiples of this


def _round_up(x, m):
    return ((x + m - 1) // m) * m


def _vmem_capacity_bytes():
    """Per-TensorCore VMEM capacity; conservative 64 MiB (v7x) fallback."""
    try:
        cap = getattr(pltpu.get_tpu_info(), "vmem_capacity_bytes", None)
        if cap:
            return int(cap)
    except Exception:
        pass
    return 64 * 2**20


# --------------------------------------------------------------------------- #
# Kernel
# --------------------------------------------------------------------------- #
def critic_kernel(x_ref, w1_ref, b1_ref, w2_ref, b2_ref, w3_ref, b3_ref, o_ref):
    """Fused fc1+ReLU -> fc2+ReLU -> fc3 for one batch tile.

    x arrives already in the matmul dtype (cast/pad done once in the wrapper);
    accumulation and the bias/ReLU epilogue are f32.
    """
    cdt = w1_ref.dtype
    # fc1 + ReLU
    h1 = jnp.dot(x_ref[...], w1_ref[...],
                 preferred_element_type=jnp.float32) + b1_ref[...]
    h1 = jnp.maximum(h1, 0.0)
    # fc2 + ReLU
    h2 = jnp.dot(h1.astype(cdt), w2_ref[...],
                 preferred_element_type=jnp.float32) + b2_ref[...]
    h2 = jnp.maximum(h2, 0.0)
    # fc3 (value head, no activation); store only the real value columns
    y = jnp.dot(h2.astype(cdt), w3_ref[...],
                preferred_element_type=jnp.float32) + b3_ref[...]
    o_ref[...] = y[:, : o_ref.shape[-1]]


# --------------------------------------------------------------------------- #
# Parameter preparation (amortized: call once, reuse across forward calls)
# --------------------------------------------------------------------------- #
def prepare_params(params, *, matmul_dtype=None):
    """Pad weights/biases to lane-aligned shapes and cast to the matmul dtype.

    params: dict with w1/w2/w3 stored as [in, out] (transposed vs. PyTorch's
    [out, in]) and b1/b2/b3 as [1, out] (or [out]).  Zero padding preserves
    the math: padded rows/cols and bias lanes contribute 0, ReLU(0) = 0.
    """
    w1, b1 = params["w1"], params["b1"]
    w2, b2 = params["w2"], params["b2"]
    w3, b3 = params["w3"], params["b3"]

    obs_dim, hidden = w1.shape
    value_dim = w3.shape[1]
    obs_p = _round_up(obs_dim, LANE)
    hid_p = _round_up(hidden, LANE)
    out_p = _round_up(value_dim, LANE)   # w3/b3 stay lane-aligned for the MXU

    vmem_cap = _vmem_capacity_bytes()
    if matmul_dtype is None:
        # Keep f32 parity when resident f32 weights comfortably fit VMEM;
        # otherwise use bf16 MXU operands (f32 accumulate) so the fused kernel
        # still fits v7x's 64 MiB per-TC VMEM (and doubles MXU throughput).
        w_f32_bytes = (obs_p * hid_p + hid_p * hid_p + hid_p * out_p) * 4
        matmul_dtype = jnp.float32 if w_f32_bytes <= vmem_cap // 2 else jnp.bfloat16
    # TODO(synk): for hidden sizes where even bf16 weights exceed VMEM, add a
    # hidden-split ("arbitrary") grid axis with an f32 VMEM accumulator instead
    # of keeping all three weight matrices fully resident.

    mdt = jnp.dtype(matmul_dtype)
    f32 = jnp.float32
    b1 = jnp.asarray(b1).reshape(1, -1)
    b2 = jnp.asarray(b2).reshape(1, -1)
    b3 = jnp.asarray(b3).reshape(1, -1)

    return {
        "w1": jnp.pad(w1, ((0, obs_p - obs_dim), (0, hid_p - hidden))).astype(mdt),
        "b1": jnp.pad(b1, ((0, 0), (0, hid_p - hidden))).astype(f32),
        "w2": jnp.pad(w2, ((0, hid_p - hidden), (0, hid_p - hidden))).astype(mdt),
        "b2": jnp.pad(b2, ((0, 0), (0, hid_p - hidden))).astype(f32),
        "w3": jnp.pad(w3, ((0, hid_p - hidden), (0, out_p - value_dim))).astype(mdt),
        "b3": jnp.pad(b3, ((0, 0), (0, out_p - value_dim))).astype(f32),
        "dims": (obs_dim, hidden, value_dim, obs_p, hid_p, out_p),
        "matmul_dtype": mdt,
        "vmem_cap": vmem_cap,
    }


# --------------------------------------------------------------------------- #
# Forward
# --------------------------------------------------------------------------- #
def critic_forward(state, prepared, *, tile_b=512):
    """state: [B, obs_dim] float32; prepared: output of prepare_params.

    Returns [B, value_dim] float32 == fc3(relu(fc2(relu(fc1(state))))).
    """
    obs_dim, hidden, value_dim, obs_p, hid_p, out_p = prepared["dims"]
    mdt = prepared["matmul_dtype"]
    vmem_cap = prepared["vmem_cap"]

    B = state.shape[0]
    assert state.shape[1] == obs_dim

    # Batch tiling: tiles divide the batch tightly (little over-padding) and we
    # get >= 2 grid steps whenever possible so both v7x TCs see work.
    n_tiles = max(pl.cdiv(B, tile_b), 2 if B > SUBLANE else 1)
    tb = _round_up(pl.cdiv(B, n_tiles), SUBLANE)
    B_p = _round_up(B, tb)
    grid = (B_p // tb,)

    # Per-call input prep: pad to the tile grid and cast to the matmul dtype
    # (halves the per-step activation DMA and x VMEM on the bf16 path).
    x_p = jnp.pad(state.astype(mdt), ((0, B_p - B), (0, obs_p - obs_dim)))

    # VMEM budget from the actual working set, capped per generation.
    it = mdt.itemsize
    w_elems = obs_p * hid_p + hid_p * hid_p + hid_p * out_p
    b_elems = 2 * hid_p + out_p

    def _vmem_limit(weight_bufs):
        step = (2 * tb * obs_p * it                      # x tile (double-buffered)
                + 2 * tb * value_dim * 4                 # narrow output tile (2-buf)
                + weight_bufs * (w_elems * it + b_elems * 4)   # resident weights/biases
                + 2 * tb * hid_p * 4 + tb * out_p * 4)   # h1/h2/y f32 intermediates
        return int(min(int(0.85 * vmem_cap), max(32 * 2**20, int(1.5 * step))))

    def _run(single_buffer_weights):
        wkw = dict(pipeline_mode=pl.Buffered(1)) if single_buffer_weights else {}
        in_specs = [
            pl.BlockSpec((tb, obs_p), lambda i: (i, 0)),              # state: walks batch
            pl.BlockSpec((obs_p, hid_p), lambda i: (0, 0), **wkw),    # w1: VMEM-resident
            pl.BlockSpec((1, hid_p), lambda i: (0, 0), **wkw),        # b1
            pl.BlockSpec((hid_p, hid_p), lambda i: (0, 0), **wkw),    # w2
            pl.BlockSpec((1, hid_p), lambda i: (0, 0), **wkw),        # b2
            pl.BlockSpec((hid_p, out_p), lambda i: (0, 0), **wkw),    # w3
            pl.BlockSpec((1, out_p), lambda i: (0, 0), **wkw),        # b3
        ]
        out_specs = pl.BlockSpec((tb, value_dim), lambda i: (i, 0))   # narrow value head
        return pl.pallas_call(
            critic_kernel,
            out_shape=jax.ShapeDtypeStruct((B_p, value_dim), jnp.float32),
            grid=grid,
            in_specs=in_specs,
            out_specs=out_specs,
            compiler_params=pltpu.CompilerParams(
                dimension_semantics=("parallel",),   # batch tiles shard across TCs (v7x)
                vmem_limit_bytes=_vmem_limit(1 if single_buffer_weights else 2),
            ),
        )(x_p, prepared["w1"], prepared["b1"], prepared["w2"], prepared["b2"],
          prepared["w3"], prepared["b3"])

    try:
        out_padded = _run(True)
    except Exception:
        # pl.Buffered(1) rejected by this jax/Mosaic build: fall back to the
        # default double-buffered weight pipeline (correct, slightly more VMEM).
        out_padded = _run(False)

    return out_padded[:B]


# --------------------------------------------------------------------------- #
# Init / reference
# --------------------------------------------------------------------------- #
def init_params(key, obs_dim, hidden_size, value_dim=1):
    """Deterministic init mimicking nn.Linear's U(-1/sqrt(fan_in), 1/sqrt(fan_in))."""
    ks = jax.random.split(key, 6)

    def linear(kw, kb, fan_in, fan_out):
        bound = 1.0 / jnp.sqrt(jnp.float32(fan_in))
        # stored as [in, out] (transposed vs. PyTorch's [out, in])
        w = jax.random.uniform(kw, (fan_in, fan_out), jnp.float32, -bound, bound)
        b = jax.random.uniform(kb, (1, fan_out), jnp.float32, -bound, bound)
        return w, b

    w1, b1 = linear(ks[0], ks[1], obs_dim, hidden_size)
    w2, b2 = linear(ks[2], ks[3], hidden_size, hidden_size)
    w3, b3 = linear(ks[4], ks[5], hidden_size, value_dim)
    return {"w1": w1, "b1": b1, "w2": w2, "b2": b2, "w3": w3, "b3": b3}


def critic_reference(state, params):
    """Pure-JAX reference of the PyTorch forward."""
    h1 = jnp.maximum(state @ params["w1"] + params["b1"], 0.0)
    h2 = jnp.maximum(h1 @ params["w2"] + params["b2"], 0.0)
    return h2 @ params["w3"] + params["b3"]


if __name__ == "__main__":
    batch, obs_dim, hidden_size, value_dim = 2, 8, 32, 1

    key = jax.random.PRNGKey(0)
    k_params, k_state = jax.random.split(key)
    params = init_params(k_params, obs_dim, hidden_size, value_dim)
    state = jax.random.normal(k_state, (batch, obs_dim), jnp.float32)

    ref = critic_reference(state, params)

    # f32 MXU operands: bit-level parity with the PyTorch/JAX reference.
    prep_f32 = prepare_params(params, matmul_dtype=jnp.float32)
    out_f32 = jax.block_until_ready(critic_forward(state, prep_f32))
    assert out_f32.shape == (batch, value_dim)
    assert jnp.allclose(out_f32, ref, atol=1e-5, rtol=1e-5)

    # bf16 MXU operands (fast path on every generation), f32 accumulate/epilogue.
    prep_bf16 = prepare_params(params, matmul_dtype=jnp.bfloat16)
    out_bf16 = jax.block_until_ready(critic_forward(state, prep_bf16))
    assert out_bf16.shape == (batch, value_dim)
    assert jnp.allclose(out_bf16, ref, atol=5e-2, rtol=5e-2)

    print("KERNEL_OK")
</pallas_src>

<mosaic_0001>
module attributes {stable_mosaic.version = 11 : i64} {
  func.func @critic_kernel(%arg0: i32, %arg1: memref<8x128xf32, #tpu.memory_space<vmem>>, %arg2: memref<128x128xf32, #tpu.memory_space<vmem>>, %arg3: memref<1x128xf32, #tpu.memory_space<vmem>>, %arg4: memref<128x128xf32, #tpu.memory_space<vmem>>, %arg5: memref<1x128xf32, #tpu.memory_space<vmem>>, %arg6: memref<128x128xf32, #tpu.memory_space<vmem>>, %arg7: memref<1x128xf32, #tpu.memory_space<vmem>>, %arg8: memref<8x1xf32, #tpu.memory_space<vmem>>) attributes {dimension_semantics = [#tpu.dimension_semantics<parallel>], iteration_bounds = array<i64: 1>, scalar_prefetch = 0 : i64, scratch_operands = 0 : i64, tpu.core_type = #tpu.core_type<tc>, window_params = [{transform_indices = @transform_0, window_bounds = array<i64: 8, 128>}, {pipeline_mode = #tpu.pipeline_mode<synchronous>, transform_indices = @transform_1, window_bounds = array<i64: 128, 128>}, {pipeline_mode = #tpu.pipeline_mode<synchronous>, transform_indices = @transform_2, window_bounds = array<i64: 1, 128>}, {pipeline_mode = #tpu.pipeline_mode<synchronous>, transform_indices = @transform_3, window_bounds = array<i64: 128, 128>}, {pipeline_mode = #tpu.pipeline_mode<synchronous>, transform_indices = @transform_4, window_bounds = array<i64: 1, 128>}, {pipeline_mode = #tpu.pipeline_mode<synchronous>, transform_indices = @transform_5, window_bounds = array<i64: 128, 128>}, {pipeline_mode = #tpu.pipeline_mode<synchronous>, transform_indices = @transform_6, window_bounds = array<i64: 1, 128>}, {transform_indices = @transform_7, window_bounds = array<i64: 8, 1>}]} {
    %c0 = arith.constant 0 : index
    %c0_0 = arith.constant 0 : index
    %0 = vector.load %arg1[%c0, %c0_0] : memref<8x128xf32, #tpu.memory_space<vmem>>, vector<8x128xf32>
    %c0_1 = arith.constant 0 : index
    %c0_2 = arith.constant 0 : index
    %1 = vector.load %arg2[%c0_1, %c0_2] : memref<128x128xf32, #tpu.memory_space<vmem>>, vector<128x128xf32>
    %cst = arith.constant dense<0.000000e+00> : vector<8x128xf32>
    %2 = tpu.matmul %0, %1, %cst {dimension_numbers = #tpu.dot_dimension_numbers<[1], [0], [0], [1], [0, 0, 1, 1], [], []>} : vector<8x128xf32>, vector<128x128xf32>, vector<8x128xf32> -> vector<8x128xf32>
    %c0_3 = arith.constant 0 : index
    %c0_4 = arith.constant 0 : index
    %3 = vector.load %arg3[%c0_3, %c0_4] : memref<1x128xf32, #tpu.memory_space<vmem>>, vector<1x128xf32>
    %4 = vector.broadcast %3 : vector<1x128xf32> to vector<8x128xf32>
    %5 = arith.addf %2, %4 : vector<8x128xf32>
    %cst_5 = arith.constant 0.000000e+00 : f32
    %6 = vector.broadcast %cst_5 : f32 to vector<8x128xf32>
    %7 = arith.maximumf %5, %6 : vector<8x128xf32>
    %c0_6 = arith.constant 0 : index
    %c0_7 = arith.constant 0 : index
    %8 = vector.load %arg4[%c0_6, %c0_7] : memref<128x128xf32, #tpu.memory_space<vmem>>, vector<128x128xf32>
    %cst_8 = arith.constant dense<0.000000e+00> : vector<8x128xf32>
    %9 = tpu.matmul %7, %8, %cst_8 {dimension_numbers = #tpu.dot_dimension_numbers<[1], [0], [0], [1], [0, 0, 1, 1], [], []>} : vector<8x128xf32>, vector<128x128xf32>, vector<8x128xf32> -> vector<8x128xf32>
    %c0_9 = arith.constant 0 : index
    %c0_10 = arith.constant 0 : index
    %10 = vector.load %arg5[%c0_9, %c0_10] : memref<1x128xf32, #tpu.memory_space<vmem>>, vector<1x128xf32>
    %11 = vector.broadcast %10 : vector<1x128xf32> to vector<8x128xf32>
    %12 = arith.addf %9, %11 : vector<8x128xf32>
    %cst_11 = arith.constant 0.000000e+00 : f32
    %13 = vector.broadcast %cst_11 : f32 to vector<8x128xf32>
    %14 = arith.maximumf %12, %13 : vector<8x128xf32>
    %c0_12 = arith.constant 0 : index
    %c0_13 = arith.constant 0 : index
    %15 = vector.load %arg6[%c0_12, %c0_13] : memref<128x128xf32, #tpu.memory_space<vmem>>, vector<128x128xf32>
    %cst_14 = arith.constant dense<0.000000e+00> : vector<8x128xf32>
    %16 = tpu.matmul %14, %15, %cst_14 {dimension_numbers = #tpu.dot_dimension_numbers<[1], [0], [0], [1], [0, 0, 1, 1], [], []>} : vector<8x128xf32>, vector<128x128xf32>, vector<8x128xf32> -> vector<8x128xf32>
    %c0_15 = arith.constant 0 : index
    %c0_16 = arith.constant 0 : index
    %17 = vector.load %arg7[%c0_15, %c0_16] : memref<1x128xf32, #tpu.memory_space<vmem>>, vector<1x128xf32>
    %18 = vector.broadcast %17 : vector<1x128xf32> to vector<8x128xf32>
    %19 = arith.addf %16, %18 : vector<8x128xf32>
    %20 = vector.extract_strided_slice %19 {offsets = [0, 0], sizes = [8, 1], strides = [1, 1]} : vector<8x128xf32> to vector<8x1xf32>
    %c0_17 = arith.constant 0 : index
    %c0_18 = arith.constant 0 : index
    %21 = vector.load %arg8[%c0_17, %c0_18] : memref<8x1xf32, #tpu.memory_space<vmem>>, vector<8x1xf32>
    tpu.vector_store %arg8[%c0_17, %c0_18], %20 {strides = array<i32>} : memref<8x1xf32, #tpu.memory_space<vmem>>, vector<8x1xf32>,
    return
  }
  func.func @transform_0(%arg0: i32) -> (i32, i32) {
    %c0_i32 = arith.constant 0 : i32
    %c0_i32_0 = arith.constant 0 : i32
    return %arg0, %c0_i32 : i32, i32
  }
  func.func @transform_1(%arg0: i32) -> (i32, i32) {
    %c0_i32 = arith.constant 0 : i32
    %c0_i32_0 = arith.constant 0 : i32
    %c0_i32_1 = arith.constant 0 : i32
    return %c0_i32, %c0_i32_0 : i32, i32
  }
  func.func @transform_2(%arg0: i32) -> (i32, i32) {
    %c0_i32 = arith.constant 0 : i32
    %c0_i32_0 = arith.constant 0 : i32
    %c0_i32_1 = arith.constant 0 : i32
    return %c0_i32, %c0_i32_0 : i32, i32
  }
  func.func @transform_3(%arg0: i32) -> (i32, i32) {
    %c0_i32 = arith.constant 0 : i32
    %c0_i32_0 = arith.constant 0 : i32
    %c0_i32_1 = arith.constant 0 : i32
    return %c0_i32, %c0_i32_0 : i32, i32
  }
  func.func @transform_4(%arg0: i32) -> (i32, i32) {
    %c0_i32 = arith.constant 0 : i32
    %c0_i32_0 = arith.constant 0 : i32
    %c0_i32_1 = arith.constant 0 : i32
    return %c0_i32, %c0_i32_0 : i32, i32
  }
  func.func @transform_5(%arg0: i32) -> (i32, i32) {
    %c0_i32 = arith.constant 0 : i32
    %c0_i32_0 = arith.constant 0 : i32
    %c0_i32_1 = arith.constant 0 : i32
    return %c0_i32, %c0_i32_0 : i32, i32
  }
  func.func @transform_6(%arg0: i32) -> (i32, i32) {
    %c0_i32 = arith.constant 0 : i32
    %c0_i32_0 = arith.constant 0 : i32
    %c0_i32_1 = arith.constant 0 : i32
    return %c0_i32, %c0_i32_0 : i32, i32
  }
  func.func @transform_7(%arg0: i32) -> (i32, i32) {
    %c0_i32 = arith.constant 0 : i32
    %c0_i32_0 = arith.constant 0 : i32
    return %arg0, %c0_i32 : i32, i32
  }
}

module attributes {stable_mosaic.version = 11 : i64} {
  func.func @critic_kernel(%arg0: i32, %arg1: memref<8x128xf32, #tpu.memory_space<vmem>>, %arg2: memref<128x128xf32, #tpu.memory_space<vmem>>, %arg3: memref<1x128xf32, #tpu.memory_space<vmem>>, %arg4: memref<128x128xf32, #tpu.memory_space<vmem>>, %arg5: memref<1x128xf32, #tpu.memory_space<vmem>>, %arg6: memref<128x128xf32, #tpu.memory_space<vmem>>, %arg7: memref<1x128xf32, #tpu.memory_space<vmem>>, %arg8: memref<8x1xf32, #tpu.memory_space<vmem>>) attributes {dimension_semantics = [#tpu.dimension_semantics<parallel>], iteration_bounds = array<i64: 1>, scalar_prefetch = 0 : i64, scratch_operands = 0 : i64, tpu.core_type = #tpu.core_type<tc>, window_params = [{transform_indices = @transform_0, window_bounds = array<i64: 8, 128>}, {pipeline_mode = #tpu.pipeline_mode<synchronous>, transform_indices = @transform_1, window_bounds = array<i64: 128, 128>}, {pipeline_mode = #tpu.pipeline_mode<synchronous>, transform_indices = @transform_2, window_bounds = array<i64: 1, 128>}, {pipeline_mode = #tpu.pipeline_mode<synchronous>, transform_indices = @transform_3, window_bounds = array<i64: 128, 128>}, {pipeline_mode = #tpu.pipeline_mode<synchronous>, transform_indices = @transform_4, window_bounds = array<i64: 1, 128>}, {pipeline_mode = #tpu.pipeline_mode<synchronous>, transform_indices = @transform_5, window_bounds = array<i64: 128, 128>}, {pipeline_mode = #tpu.pipeline_mode<synchronous>, transform_indices = @transform_6, window_bounds = array<i64: 1, 128>}, {transform_indices = @transform_7, window_bounds = array<i64: 8, 1>}]} {
    %c0 = arith.constant 0 : index
    %c0_0 = arith.constant 0 : index
    %0 = vector.load %arg1[%c0, %c0_0] : memref<8x128xf32, #tpu.memory_space<vmem>>, vector<8x128xf32>
    %c0_1 = arith.constant 0 : index
    %c0_2 = arith.constant 0 : index
    %1 = vector.load %arg2[%c0_1, %c0_2] : memref<128x128xf32, #tpu.memory_space<vmem>>, vector<128x128xf32>
    %cst = arith.constant dense<0.000000e+00> : vector<8x128xf32>
    %2 = tpu.matmul %0, %1, %cst {dimension_numbers = #tpu.dot_dimension_numbers<[1], [0], [0], [1], [0, 0, 1, 1], [], []>} : vector<8x128xf32>, vector<128x128xf32>, vector<8x128xf32> -> vector<8x128xf32>
    %c0_3 = arith.constant 0 : index
    %c0_4 = arith.constant 0 : index
    %3 = vector.load %arg3[%c0_3, %c0_4] : memref<1x128xf32, #tpu.memory_space<vmem>>, vector<1x128xf32>
    %4 = vector.broadcast %3 : vector<1x128xf32> to vector<8x128xf32>
    %5 = arith.addf %2, %4 : vector<8x128xf32>
    %cst_5 = arith.constant 0.000000e+00 : f32
    %6 = vector.broadcast %cst_5 : f32 to vector<8x128xf32>
    %7 = arith.maximumf %5, %6 : vector<8x128xf32>
    %c0_6 = arith.constant 0 : index
    %c0_7 = arith.constant 0 : index
    %8 = vector.load %arg4[%c0_6, %c0_7] : memref<128x128xf32, #tpu.memory_space<vmem>>, vector<128x128xf32>
    %cst_8 = arith.constant dense<0.000000e+00> : vector<8x128xf32>
    %9 = tpu.matmul %7, %8, %cst_8 {dimension_numbers = #tpu.dot_dimension_numbers<[1], [0], [0], [1], [0, 0, 1, 1], [], []>} : vector<8x128xf32>, vector<128x128xf32>, vector<8x128xf32> -> vector<8x128xf32>
    %c0_9 = arith.constant 0 : index
    %c0_10 = arith.constant 0 : index
    %10 = vector.load %arg5[%c0_9, %c0_10] : memref<1x128xf32, #tpu.memory_space<vmem>>, vector<1x128xf32>
    %11 = vector.broadcast %10 : vector<1x128xf32> to vector<8x128xf32>
    %12 = arith.addf %9, %11 : vector<8x128xf32>
    %cst_11 = arith.constant 0.000000e+00 : f32
    %13 = vector.broadcast %cst_11 : f32 to vector<8x128xf32>
    %14 = arith.maximumf %12, %13 : vector<8x128xf32>
    %c0_12 = arith.constant 0 : index
    %c0_13 = arith.constant 0 : index
    %15 = vector.load %arg6[%c0_12, %c0_13] : memref<128x128xf32, #tpu.memory_space<vmem>>, vector<128x128xf32>
    %cst_14 = arith.constant dense<0.000000e+00> : vector<8x128xf32>
    %16 = tpu.matmul %14, %15, %cst_14 {dimension_numbers = #tpu.dot_dimension_numbers<[1], [0], [0], [1], [0, 0, 1, 1], [], []>} : vector<8x128xf32>, vector<128x128xf32>, vector<8x128xf32> -> vector<8x128xf32>
    %c0_15 = arith.constant 0 : index
    %c0_16 = arith.constant 0 : index
    %17 = vector.load %arg7[%c0_15, %c0_16] : memref<1x128xf32, #tpu.memory_space<vmem>>, vector<1x128xf32>
    %18 = vector.broadcast %17 : vector<1x128xf32> to vector<8x128xf32>
    %19 = arith.addf %16, %18 : vector<8x128xf32>
    %20 = vector.extract_strided_slice %19 {offsets = [0, 0], sizes = [8, 1], strides = [1, 1]} : vector<8x128xf32> to vector<8x1xf32>
    %c0_17 = arith.constant 0 : index
    %c0_18 = arith.constant 0 : index
    %21 = vector.load %arg8[%c0_17, %c0_18] : memref<8x1xf32, #tpu.memory_space<vmem>>, vector<8x1xf32>
    tpu.vector_store %arg8[%c0_17, %c0_18], %20 {strides = array<i32>} : memref<8x1xf32, #tpu.memory_space<vmem>>, vector<8x1xf32>,
    return
  }
  func.func @transform_0(%arg0: i32) -> (i32, i32) {
    %c0_i32 = arith.constant 0 : i32
    %c0_i32_0 = arith.constant 0 : i32
    return %arg0, %c0_i32 : i32, i32
  }
  func.func @transform_1(%arg0: i32) -> (i32, i32) {
    %c0_i32 = arith.constant 0 : i32
    %c0_i32_0 = arith.constant 0 : i32
    %c0_i32_1 = arith.constant 0 : i32
    return %c0_i32, %c0_i32_0 : i32, i32
  }
  func.func @transform_2(%arg0: i32) -> (i32, i32) {
    %c0_i32 = arith.constant 0 : i32
    %c0_i32_0 = arith.constant 0 : i32
    %c0_i32_1 = arith.constant 0 : i32
    return %c0_i32, %c0_i32_0 : i32, i32
  }
  func.func @transform_3(%arg0: i32) -> (i32, i32) {
    %c0_i32 = arith.constant 0 : i32
    %c0_i32_0 = arith.constant 0 : i32
    %c0_i32_1 = arith.constant 0 : i32
    return %c0_i32, %c0_i32_0 : i32, i32
  }
  func.func @transform_4(%arg0: i32) -> (i32, i32) {
    %c0_i32 = arith.constant 0 : i32
    %c0_i32_0 = arith.constant 0 : i32
    %c0_i32_1 = arith.constant 0 : i32
    return %c0_i32, %c0_i32_0 : i32, i32
  }
  func.func @transform_5(%arg0: i32) -> (i32, i32) {
    %c0_i32 = arith.constant 0 : i32
    %c0_i32_0 = arith.constant 0 : i32
    %c0_i32_1 = arith.constant 0 : i32
    return %c0_i32, %c0_i32_0 : i32, i32
  }
  func.func @transform_6(%arg0: i32) -> (i32, i32) {
    %c0_i32 = arith.constant 0 : i32
    %c0_i32_0 = arith.constant 0 : i32
    %c0_i32_1 = arith.constant 0 : i32
    return %c0_i32, %c0_i32_0 : i32, i32
  }
  func.func @transform_7(%arg0: i32) -> (i32, i32) {
    %c0_i32 = arith.constant 0 : i32
    %c0_i32_0 = arith.constant 0 : i32
    return %arg0, %c0_i32 : i32, i32
  }
}

</mosaic_0001>

<llo_original>
// kernel: tpu_custom_call.1
$region0: #{tpu_custom_call.1}
  #allocation0 [shape = 'u32[]', space=smem, size = 0x4, offset = 0x4, fixed_abs, tag = 'smem constant byte address 0x4 - core index']
  #allocation1 [shape = 'u32[144,128]{1,0:T(1,128)}', space=vmem, size = 0x12000, scoped, tag = 'internal scratch']
  %s0 = inlined_call_operand.hbm [shape: f32[8,128], index: 0, kind: input, shape index: {}]
  %s1 = inlined_call_operand.hbm [shape: f32[128,128], index: 1, kind: input, shape index: {}]
  %s2 = inlined_call_operand.vmem [shape: f32[1,128], index: 2, kind: input, shape index: {}]
  %s3 = inlined_call_operand.hbm [shape: f32[128,128], index: 3, kind: input, shape index: {}]
  %s4 = inlined_call_operand.vmem [shape: f32[1,128], index: 4, kind: input, shape index: {}]
  %s5 = inlined_call_operand.hbm [shape: f32[128,128], index: 5, kind: input, shape index: {}]
  %s6 = inlined_call_operand.vmem [shape: f32[1,128], index: 6, kind: input, shape index: {}]
  %s7 = inlined_call_operand.vmem [shape: f32[8,1], index: 7, kind: output, shape index: {}]
  %s8 = sld [smem:[#allocation0]]
  $region54: #{tpu_custom_call.1} parent=0
    _
  %s10 = ssub.s32 1, %s8
  %s11 = scalar_select 0, %s10, %s8
  $region1: #{tpu_custom_call.1} parent=0
    #allocation2 [shape = 'u8[4096]{0}', space=vmem, size = 0x1000, scoped, tag = 'input window, operand 0, single buffered']
    #allocation3 [shape = 's32[1]{0}', space=sflag, size = 0x4, scoped, tag = 'scoped memory for tpu_custom_call.1']
    #allocation4 [shape = 'u8[65536]{0}', space=vmem, size = 0x10000, scoped, tag = 'input window, operand 1, single buffered']
    #allocation5 [shape = 's32[1]{0}', space=sflag, size = 0x4, scoped, tag = 'scoped memory for tpu_custom_call.1']
    #allocation6 [shape = 'u8[65536]{0}', space=vmem, size = 0x10000, scoped, tag = 'input window, operand 3, single buffered']
    #allocation7 [shape = 'u8[65536]{0}', space=vmem, size = 0x10000, scoped, tag = 'input window, operand 5, single buffered']
    #allocation8 [shape = 's32[1]{0}', space=sflag, size = 0x4, scoped, tag = 'scoped memory for tpu_custom_call.1']
    %12 = vsyncpa [#allocation3], 0
    %13 = vsyncpa [#allocation5], 0
    %14 = vsyncpa [#allocation8], 0
    // Predicated region
    $region2: #{tpu_custom_call.1} parent=1 // pred_check
      _
    $region3: #{tpu_custom_call.1} parent=1 // pred_check_branch
      %16 = sbr.rel (0) target = $region5
    $region4: #{tpu_custom_call.1} parent=1 // pred_region
      %s18 = ssub.s32 128, 128
      %19 = vsyncadd [#allocation3], %s18
      %s21 = sshll.u32 [#allocation2], 4
      %s22 = int_to_ptr.vmem [resolvable:$true] %s21
      %24 = dma.hbm_to_vmem [thread:$0]  %s0, 128, %s22, [#allocation3]
    $region5: #{tpu_custom_call.1} parent=1 // pred_fallthru
      _
    // Predicated region
    $region6: #{tpu_custom_call.1} parent=1 // pred_check
      _
    $region7: #{tpu_custom_call.1} parent=1 // pred_check_branch
      %26 = sbr.rel (0) target = $region9
    $region8: #{tpu_custom_call.1} parent=1 // pred_region
      %s28 = ssub.s32 2048, 2048
      %29 = vsyncadd [#allocation5], %s28
      %s30 = sshll.u32 [#allocation4], 4
      %s31 = int_to_ptr.vmem [resolvable:$true] %s30
      %36 = dma.hbm_to_vmem [thread:$0]  %s1, 2048, %s31, [#allocation5], 128, 128, 8
    $region9: #{tpu_custom_call.1} parent=1 // pred_fallthru
      _
    // Predicated region
    $region10: #{tpu_custom_call.1} parent=1 // pred_check
      _
    $region11: #{tpu_custom_call.1} parent=1 // pred_check_branch
      %38 = sbr.rel (0) target = $region13
    $region12: #{tpu_custom_call.1} parent=1 // pred_region
      _
    $region13: #{tpu_custom_call.1} parent=1 // pred_fallthru
      _
    // Predicated region
    $region14: #{tpu_custom_call.1} parent=1 // pred_check
      _
    $region15: #{tpu_custom_call.1} parent=1 // pred_check_branch
      %40 = sbr.rel (0) target = $region17
    $region16: #{tpu_custom_call.1} parent=1 // pred_region
      %s42 = ssub.s32 2048, 2048
      %43 = vsyncadd [#allocation5], %s42
      %s44 = sshll.u32 [#allocation6], 4
      %s45 = int_to_ptr.vmem [resolvable:$true] %s44
      %50 = dma.hbm_to_vmem [thread:$0]  %s3, 2048, %s45, [#allocation5], 128, 128, 8
    $region17: #{tpu_custom_call.1} parent=1 // pred_fallthru
      _
    // Predicated region
    $region18: #{tpu_custom_call.1} parent=1 // pred_check
      _
    $region19: #{tpu_custom_call.1} parent=1 // pred_check_branch
      %52 = sbr.rel (0) target = $region21
    $region20: #{tpu_custom_call.1} parent=1 // pred_region
      _
    $region21: #{tpu_custom_call.1} parent=1 // pred_fallthru
      _
    // Predicated region
    $region22: #{tpu_custom_call.1} parent=1 // pred_check
      _
    $region23: #{tpu_custom_call.1} parent=1 // pred_check_branch
      %54 = sbr.rel (0) target = $region25
    $region24: #{tpu_custom_call.1} parent=1 // pred_region
      %s56 = ssub.s32 2048, 2048
      %57 = vsyncadd [#allocation8], %s56
      %s58 = sshll.u32 [#allocation7], 4
      %s59 = int_to_ptr.vmem [resolvable:$true] %s58
      %64 = dma.hbm_to_vmem [thread:$0]  %s5, 2048, %s59, [#allocation8], 128, 128, 8
    $region25: #{tpu_custom_call.1} parent=1 // pred_fallthru
      _
    // Predicated region
    $region26: #{tpu_custom_call.1} parent=1 // pred_check
      _
    $region27: #{tpu_custom_call.1} parent=1 // pred_check_branch
      %66 = sbr.rel (0) target = $region29
    $region28: #{tpu_custom_call.1} parent=1 // pred_region
      _
    $region29: #{tpu_custom_call.1} parent=1 // pred_fallthru
      _
    // Predicated region
    $region30: #{tpu_custom_call.1} parent=1 // pred_check
      _
    $region31: #{tpu_custom_call.1} parent=1 // pred_check_branch
      %68 = sbr.rel (0) target = $region33
    $region32: #{tpu_custom_call.1} parent=1 // pred_region
      %69 = dma.done [#allocation3], 128
    $region33: #{tpu_custom_call.1} parent=1 // pred_fallthru
      _
    // Predicated region
    $region34: #{tpu_custom_call.1} parent=1 // pred_check
      _
    $region35: #{tpu_custom_call.1} parent=1 // pred_check_branch
      %71 = sbr.rel (0) target = $region37
    $region36: #{tpu_custom_call.1} parent=1 // pred_region
      %72 = dma.done [#allocation5], 2048
    $region37: #{tpu_custom_call.1} parent=1 // pred_fallthru
      _
    // Predicated region
    $region38: #{tpu_custom_call.1} parent=1 // pred_check
      _
    $region39: #{tpu_custom_call.1} parent=1 // pred_check_branch
      %74 = sbr.rel (0) target = $region41
    $region40: #{tpu_custom_call.1} parent=1 // pred_region
      %75 = dma.done [#allocation5], 2048
    $region41: #{tpu_custom_call.1} parent=1 // pred_fallthru
      _
    // Predicated region
    $region42: #{tpu_custom_call.1} parent=1 // pred_check
      _
    $region43: #{tpu_custom_call.1} parent=1 // pred_check_branch
      %77 = sbr.rel (0) target = $region45
    $region44: #{tpu_custom_call.1} parent=1 // pred_region
      %78 = dma.done [#allocation8], 2048
    $region45: #{tpu_custom_call.1} parent=1 // pred_fallthru
      _
    %v79 = vld [vmem:[#allocation2] sm:$0xff]
    %v80 = vld [vmem:[#allocation4] sm:$0xff]
    %v81 = vld [vmem:[#allocation4 + $0x8] sm:$0xff]
    %v82 = vld [vmem:[#allocation4 + $0x10] sm:$0xff]
    %v83 = vld [vmem:[#allocation4 + $0x18] sm:$0xff]
    %v84 = vld [vmem:[#allocation4 + $0x20] sm:$0xff]
    %v85 = vld [vmem:[#allocation4 + $0x28] sm:$0xff]
    %v86 = vld [vmem:[#allocation4 + $0x30] sm:$0xff]
    %v87 = vld [vmem:[#allocation4 + $0x38] sm:$0xff]
    %v88 = vld [vmem:[#allocation4 + $0x40] sm:$0xff]
    %v89 = vld [vmem:[#allocation4 + $0x48] sm:$0xff]
    %v90 = vld [vmem:[#allocation4 + $0x50] sm:$0xff]
    %v91 = vld [vmem:[#allocation4 + $0x58] sm:$0xff]
    %v92 = vld [vmem:[#allocation4 + $0x60] sm:$0xff]
    %v93 = vld [vmem:[#allocation4 + $0x68] sm:$0xff]
    %v94 = vld [vmem:[#allocation4 + $0x70] sm:$0xff]
    %v95 = vld [vmem:[#allocation4 + $0x78] sm:$0xff]
    %v96 = vld [vmem:[%s2] sm:$0x1]
    %v98 = vlaneseq
    %v99 = vshrl.u32 %v98, 7
    %v100 = vsub.s32 0, %v99
    %v101 = vrot.slane %v96, %v100
    %103 = vmatprep.subr.mxu0 0.0
    %104 = vmatpush1.msra.mxu0 %v80
    %105 = vmatprep.subr.mxu0 0.0
    %106 = vmatpush1.msra.mxu0 %v81
    %107 = vmatprep.subr.mxu0 0.0
    %108 = vmatpush1.msra.mxu0 %v82
    %109 = vmatprep.subr.mxu0 0.0
    %110 = vmatpush1.msra.mxu0 %v83
    %111 = vmatprep.subr.mxu0 0.0
    %112 = vmatpush1.msra.mxu0 %v84
    %113 = vmatprep.subr.mxu0 0.0
    %114 = vmatpush1.msra.mxu0 %v85
    %115 = vmatprep.subr.mxu0 0.0
    %116 = vmatpush1.msra.mxu0 %v86
    %117 = vmatprep.subr.mxu0 0.0
    %118 = vmatpush1.msra.mxu0 %v87
    %119 = vmatprep.subr.mxu0 0.0
    %120 = vmatpush1.msra.mxu0 %v88
    %121 = vmatprep.subr.mxu0 0.0
    %122 = vmatpush1.msra.mxu0 %v89
    %123 = vmatprep.subr.mxu0 0.0
    %124 = vmatpush1.msra.mxu0 %v90
    %125 = vmatprep.subr.mxu0 0.0
    %126 = vmatpush1.msra.mxu0 %v91
    %127 = vmatprep.subr.mxu0 0.0
    %128 = vmatpush1.msra.mxu0 %v92
    %129 = vmatprep.subr.mxu0 0.0
    %130 = vmatpush1.msra.mxu0 %v93
    %131 = vmatprep.subr.mxu0 0.0
    %132 = vmatpush1.msra.mxu0 %v94
    %133 = vmatprep.subr.mxu0 0.0
    %134 = vmatpush1.msra.mxu0 %v95
    %135 = vmatprep.subr.mxu0 0.0
    %136 = vmatpush1.msra.mxu0 0.0
    %137 = vmatprep.subr.mxu0 0.0
    %138 = vmatpush1.msra.mxu0 0.0
    %139 = vmatprep.subr.mxu0 0.0
    %140 = vmatpush1.msra.mxu0 0.0
    %141 = vmatprep.subr.mxu0 0.0
    %142 = vmatpush1.msra.mxu0 0.0
    %143 = vmatprep.subr.mxu0 0.0
    %144 = vmatpush1.msra.mxu0 0.0
    %145 = vmatprep.subr.mxu0 0.0
    %146 = vmatpush1.msra.mxu0 0.0
    %147 = vmatprep.subr.mxu0 0.0
    %148 = vmatpush1.msra.mxu0 0.0
    %149 = vmatprep.subr.mxu0 0.0
    %150 = vmatpush1.msra.mxu0 0.0
    %151 = vmatprep.subr.mxu0 0.0
    %152 = vmatpush1.msra.mxu0 0.0
    %153 = vmatprep.subr.mxu0 0.0
    %154 = vmatpush1.msra.mxu0 0.0
    %155 = vmatprep.subr.mxu0 0.0
    %156 = vmatpush1.msra.mxu0 0.0
    %157 = vmatprep.subr.mxu0 0.0
    %158 = vmatpush1.msra.mxu0 0.0
    %159 = vmatprep.subr.mxu0 0.0
    %160 = vmatpush1.msra.mxu0 0.0
    %161 = vmatprep.subr.mxu0 0.0
    %162 = vmatpush1.msra.mxu0 0.0
    %163 = vmatprep.subr.mxu0 0.0
    %164 = vmatpush1.msra.mxu0 0.0
    %165 = vmatprep.subr.mxu0 0.0
    %166 = vmatpush1.msra.mxu0 0.0
    %167 = vmatprep.mubr.f32.mxu0 0.0
    %168 = vmatmul.mubr.f32.gmra.mrb[0].mxu0 %v79
    %v169 = vpop.f32.mrb[0].mxu0
    %v170 = vadd.f32 %v101, %v169
    %v171 = vpop.f32.mrb[0].mxu0
    %172 = vdwg.mxu0
    %v173 = vmax.f32 %v170, 0.0
    %v174 = vld [vmem:[#allocation6] sm:$0xff]
    %v175 = vld [vmem:[#allocation6 + $0x8] sm:$0xff]
    %v176 = vld [vmem:[#allocation6 + $0x10] sm:$0xff]
    %v177 = vld [vmem:[#allocation6 + $0x18] sm:$0xff]
    %v178 = vld [vmem:[#allocation6 + $0x20] sm:$0xff]
    %v179 = vld [vmem:[#allocation6 + $0x28] sm:$0xff]
    %v180 = vld [vmem:[#allocation6 + $0x30] sm:$0xff]
    %v181 = vld [vmem:[#allocation6 + $0x38] sm:$0xff]
    %v182 = vld [vmem:[#allocation6 + $0x40] sm:$0xff]
    %v183 = vld [vmem:[#allocation6 + $0x48] sm:$0xff]
    %v184 = vld [vmem:[#allocation6 + $0x50] sm:$0xff]
    %v185 = vld [vmem:[#allocation6 + $0x58] sm:$0xff]
    %v186 = vld [vmem:[#allocation6 + $0x60] sm:$0xff]
    %v187 = vld [vmem:[#allocation6 + $0x68] sm:$0xff]
    %v188 = vld [vmem:[#allocation6 + $0x70] sm:$0xff]
    %v189 = vld [vmem:[#allocation6 + $0x78] sm:$0xff]
    %v190 = vld [vmem:[%s4] sm:$0x1]
    %v192 = vlaneseq
    %v193 = vshrl.u32 %v192, 7
    %v194 = vsub.s32 0, %v193
    %v195 = vrot.slane %v190, %v194
    %197 = vmatprep.subr.mxu0 0.0
    %198 = vmatpush1.msra.mxu0 %v174
    %199 = vmatprep.subr.mxu0 0.0
    %200 = vmatpush1.msra.mxu0 %v175
    %201 = vmatprep.subr.mxu0 0.0
    %202 = vmatpush1.msra.mxu0 %v176
    %203 = vmatprep.subr.mxu0 0.0
    %204 = vmatpush1.msra.mxu0 %v177
    %205 = vmatprep.subr.mxu0 0.0
    %206 = vmatpush1.msra.mxu0 %v178
    %207 = vmatprep.subr.mxu0 0.0
    %208 = vmatpush1.msra.mxu0 %v179
    %209 = vmatprep.subr.mxu0 0.0
    %210 = vmatpush1.msra.mxu0 %v180
    %211 = vmatprep.subr.mxu0 0.0
    %212 = vmatpush1.msra.mxu0 %v181
    %213 = vmatprep.subr.mxu0 0.0
    %214 = vmatpush1.msra.mxu0 %v182
    %215 = vmatprep.subr.mxu0 0.0
    %216 = vmatpush1.msra.mxu0 %v183
    %217 = vmatprep.subr.mxu0 0.0
    %218 = vmatpush1.msra.mxu0 %v184
    %219 = vmatprep.subr.mxu0 0.0
    %220 = vmatpush1.msra.mxu0 %v185
    %221 = vmatprep.subr.mxu0 0.0
    %222 = vmatpush1.msra.mxu0 %v186
    %223 = vmatprep.subr.mxu0 0.0
    %224 = vmatpush1.msra.mxu0 %v187
    %225 = vmatprep.subr.mxu0 0.0
    %226 = vmatpush1.msra.mxu0 %v188
    %227 = vmatprep.subr.mxu0 0.0
    %228 = vmatpush1.msra.mxu0 %v189
    %229 = vmatprep.subr.mxu0 0.0
    %230 = vmatpush1.msra.mxu0 0.0
    %231 = vmatprep.subr.mxu0 0.0
    %232 = vmatpush1.msra.mxu0 0.0
    %233 = vmatprep.subr.mxu0 0.0
    %234 = vmatpush1.msra.mxu0 0.0
    %235 = vmatprep.subr.mxu0 0.0
    %236 = vmatpush1.msra.mxu0 0.0
    %237 = vmatprep.subr.mxu0 0.0
    %238 = vmatpush1.msra.mxu0 0.0
    %239 = vmatprep.subr.mxu0 0.0
    %240 = vmatpush1.msra.mxu0 0.0
    %241 = vmatprep.subr.mxu0 0.0
    %242 = vmatpush1.msra.mxu0 0.0
    %243 = vmatprep.subr.mxu0 0.0
    %244 = vmatpush1.msra.mxu0 0.0
    %245 = vmatprep.subr.mxu0 0.0
    %246 = vmatpush1.msra.mxu0 0.0
    %247 = vmatprep.subr.mxu0 0.0
    %248 = vmatpush1.msra.mxu0 0.0
    %249 = vmatprep.subr.mxu0 0.0
    %250 = vmatpush1.msra.mxu0 0.0
    %251 = vmatprep.subr.mxu0 0.0
    %252 = vmatpush1.msra.mxu0 0.0
    %253 = vmatprep.subr.mxu0 0.0
    %254 = vmatpush1.msra.mxu0 0.0
    %255 = vmatprep.subr.mxu0 0.0
    %256 = vmatpush1.msra.mxu0 0.0
    %257 = vmatprep.subr.mxu0 0.0
    %258 = vmatpush1.msra.mxu0 0.0
    %259 = vmatprep.subr.mxu0 0.0
    %260 = vmatpush1.msra.mxu0 0.0
    %261 = vmatprep.mubr.f32.mxu0 0.0
    %262 = vmatmul.mubr.f32.gmra.mrb[0].mxu0 %v173
    %v263 = vpop.f32.mrb[0].mxu0
    %v264 = vadd.f32 %v195, %v263
    %v265 = vpop.f32.mrb[0].mxu0
    %266 = vdwg.mxu0
    %v267 = vmax.f32 %v264, 0.0
    %v268 = vld [vmem:[#allocation7] sm:$0xff]
    %v269 = vld [vmem:[#allocation7 + $0x8] sm:$0xff]
    %v270 = vld [vmem:[#allocation7 + $0x10] sm:$0xff]
    %v271 = vld [vmem:[#allocation7 + $0x18] sm:$0xff]
    %v272 = vld [vmem:[#allocation7 + $0x20] sm:$0xff]
    %v273 = vld [vmem:[#allocation7 + $0x28] sm:$0xff]
    %v274 = vld [vmem:[#allocation7 + $0x30] sm:$0xff]
    %v275 = vld [vmem:[#allocation7 + $0x38] sm:$0xff]
    %v276 = vld [vmem:[#allocation7 + $0x40] sm:$0xff]
    %v277 = vld [vmem:[#allocation7 + $0x48] sm:$0xff]
    %v278 = vld [vmem:[#allocation7 + $0x50] sm:$0xff]
    %v279 = vld [vmem:[#allocation7 + $0x58] sm:$0xff]
    %v280 = vld [vmem:[#allocation7 + $0x60] sm:$0xff]
    %v281 = vld [vmem:[#allocation7 + $0x68] sm:$0xff]
    %v282 = vld [vmem:[#allocation7 + $0x70] sm:$0xff]
    %v283 = vld [vmem:[#allocation7 + $0x78] sm:$0xff]
    %v284 = vld [vmem:[%s6] sm:$0x1]
    %v286 = vlaneseq
    %v287 = vshrl.u32 %v286, 7
    %v288 = vsub.s32 0, %v287
    %v289 = vrot.slane %v284, %v288
    %291 = vmatprep.subr.mxu0 0.0
    %292 = vmatpush1.msra.mxu0 %v268
    %293 = vmatprep.subr.mxu0 0.0
    %294 = vmatpush1.msra.mxu0 %v269
    %295 = vmatprep.subr.mxu0 0.0
    %296 = vmatpush1.msra.mxu0 %v270
    %297 = vmatprep.subr.mxu0 0.0
    %298 = vmatpush1.msra.mxu0 %v271
    %299 = vmatprep.subr.mxu0 0.0
    %300 = vmatpush1.msra.mxu0 %v272
    %301 = vmatprep.subr.mxu0 0.0
    %302 = vmatpush1.msra.mxu0 %v273
    %303 = vmatprep.subr.mxu0 0.0
    %304 = vmatpush1.msra.mxu0 %v274
    %305 = vmatprep.subr.mxu0 0.0
    %306 = vmatpush1.msra.mxu0 %v275
    %307 = vmatprep.subr.mxu0 0.0
    %308 = vmatpush1.msra.mxu0 %v276
    %309 = vmatprep.subr.mxu0 0.0
    %310 = vmatpush1.msra.mxu0 %v277
    %311 = vmatprep.subr.mxu0 0.0
    %312 = vmatpush1.msra.mxu0 %v278
    %313 = vmatprep.subr.mxu0 0.0
    %314 = vmatpush1.msra.mxu0 %v279
    %315 = vmatprep.subr.mxu0 0.0
    %316 = vmatpush1.msra.mxu0 %v280
    %317 = vmatprep.subr.mxu0 0.0
    %318 = vmatpush1.msra.mxu0 %v281
    %319 = vmatprep.subr.mxu0 0.0
    %320 = vmatpush1.msra.mxu0 %v282
    %321 = vmatprep.subr.mxu0 0.0
    %322 = vmatpush1.msra.mxu0 %v283
    %323 = vmatprep.subr.mxu0 0.0
    %324 = vmatpush1.msra.mxu0 0.0
    %325 = vmatprep.subr.mxu0 0.0
    %326 = vmatpush1.msra.mxu0 0.0
    %327 = vmatprep.subr.mxu0 0.0
    %328 = vmatpush1.msra.mxu0 0.0
    %329 = vmatprep.subr.mxu0 0.0
    %330 = vmatpush1.msra.mxu0 0.0
    %331 = vmatprep.subr.mxu0 0.0
    %332 = vmatpush1.msra.mxu0 0.0
    %333 = vmatprep.subr.mxu0 0.0
    %334 = vmatpush1.msra.mxu0 0.0
    %335 = vmatprep.subr.mxu0 0.0
    %336 = vmatpush1.msra.mxu0 0.0
    %337 = vmatprep.subr.mxu0 0.0
    %338 = vmatpush1.msra.mxu0 0.0
    %339 = vmatprep.subr.mxu0 0.0
    %340 = vmatpush1.msra.mxu0 0.0
    %341 = vmatprep.subr.mxu0 0.0
    %342 = vmatpush1.msra.mxu0 0.0
    %343 = vmatprep.subr.mxu0 0.0
    %344 = vmatpush1.msra.mxu0 0.0
    %345 = vmatprep.subr.mxu0 0.0
    %346 = vmatpush1.msra.mxu0 0.0
    %347 = vmatprep.subr.mxu0 0.0
    %348 = vmatpush1.msra.mxu0 0.0
    %349 = vmatprep.subr.mxu0 0.0
    %350 = vmatpush1.msra.mxu0 0.0
    %351 = vmatprep.subr.mxu0 0.0
    %352 = vmatpush1.msra.mxu0 0.0
    %353 = vmatprep.subr.mxu0 0.0
    %354 = vmatpush1.msra.mxu0 0.0
    %355 = vmatprep.mubr.f32.mxu0 0.0
    %356 = vmatmul.mubr.f32.gmra.mrb[0].mxu0 %v267
    %v357 = vpop.f32.mrb[0].mxu0
    %v358 = vadd.f32 %v289, %v357
    %v359 = vpop.f32.mrb[0].mxu0
    %360 = vdwg.mxu0
    %vm361 = vcmask 7168
    %362 = vst.msk [vmem:[%s7] sm:$0xff] %vm361, %v358
    // Predicated region
    $region46: #{tpu_custom_call.1} parent=1 // pred_check
      _
    $region47: #{tpu_custom_call.1} parent=1 // pred_check_branch
      %364 = sbr.rel (0) target = $region49
    $region48: #{tpu_custom_call.1} parent=1 // pred_region
      _
    $region49: #{tpu_custom_call.1} parent=1 // pred_fallthru
      _
    // Predicated region
    $region50: #{tpu_custom_call.1} parent=1 // pred_check
      _
    $region51: #{tpu_custom_call.1} parent=1 // pred_check_branch
      %366 = sbr.rel (0) target = $region53
    $region52: #{tpu_custom_call.1} parent=1 // pred_region
      _
    $region53: #{tpu_custom_call.1} parent=1 // pred_fallthru
      _
    %367 = vsyncpa [#allocation3], 1
    %368 = vsyncpa [#allocation5], 1
    %369 = vsyncpa [#allocation8], 1

// kernel: tpu_custom_call.1
$region0: #{tpu_custom_call.1}
  #allocation0 [shape = 'u32[]', space=smem, size = 0x4, offset = 0x4, fixed_abs, tag = 'smem constant byte address 0x4 - core index']
  #allocation1 [shape = 'u32[144,128]{1,0:T(1,128)}', space=vmem, size = 0x12000, scoped, tag = 'internal scratch']
  %s0 = inlined_call_operand.hbm [shape: f32[8,128], index: 0, kind: input, shape index: {}]
  %s1 = inlined_call_operand.hbm [shape: f32[128,128], index: 1, kind: input, shape index: {}]
  %s2 = inlined_call_operand.vmem [shape: f32[1,128], index: 2, kind: input, shape index: {}]
  %s3 = inlined_call_operand.hbm [shape: f32[128,128], index: 3, kind: input, shape index: {}]
  %s4 = inlined_call_operand.vmem [shape: f32[1,128], index: 4, kind: input, shape index: {}]
  %s5 = inlined_call_operand.hbm [shape: f32[128,128], index: 5, kind: input, shape index: {}]
  %s6 = inlined_call_operand.vmem [shape: f32[1,128], index: 6, kind: input, shape index: {}]
  %s7 = inlined_call_operand.vmem [shape: f32[8,1], index: 7, kind: output, shape index: {}]
  %s8 = sld [smem:[#allocation0]]
  $region54: #{tpu_custom_call.1} parent=0
    _
  %s10 = ssub.s32 1, %s8
  %s11 = scalar_select 0, %s10, %s8
  $region1: #{tpu_custom_call.1} parent=0
    #allocation2 [shape = 'u8[4096]{0}', space=vmem, size = 0x1000, scoped, tag = 'input window, operand 0, single buffered']
    #allocation3 [shape = 's32[1]{0}', space=sflag, size = 0x4, scoped, tag = 'scoped memory for tpu_custom_call.1']
    #allocation4 [shape = 'u8[65536]{0}', space=vmem, size = 0x10000, scoped, tag = 'input window, operand 1, single buffered']
    #allocation5 [shape = 's32[1]{0}', space=sflag, size = 0x4, scoped, tag = 'scoped memory for tpu_custom_call.1']
    #allocation6 [shape = 'u8[65536]{0}', space=vmem, size = 0x10000, scoped, tag = 'input window, operand 3, single buffered']
    #allocation7 [shape = 'u8[65536]{0}', space=vmem, size = 0x10000, scoped, tag = 'input window, operand 5, single buffered']
    #allocation8 [shape = 's32[1]{0}', space=sflag, size = 0x4, scoped, tag = 'scoped memory for tpu_custom_call.1']
    %12 = vsyncpa [#allocation3], 0
    %13 = vsyncpa [#allocation5], 0
    %14 = vsyncpa [#allocation8], 0
    // Predicated region
    $region2: #{tpu_custom_call.1} parent=1 // pred_check
      _
    $region3: #{tpu_custom_call.1} parent=1 // pred_check_branch
      %16 = sbr.rel (0) target = $region5
    $region4: #{tpu_custom_call.1} parent=1 // pred_region
      %s18 = ssub.s32 128, 128
      %19 = vsyncadd [#allocation3], %s18
      %s21 = sshll.u32 [#allocation2], 4
      %s22 = int_to_ptr.vmem [resolvable:$true] %s21
      %24 = dma.hbm_to_vmem [thread:$0]  %s0, 128, %s22, [#allocation3]
    $region5: #{tpu_custom_call.1} parent=1 // pred_fallthru
      _
    // Predicated region
    $region6: #{tpu_custom_call.1} parent=1 // pred_check
      _
    $region7: #{tpu_custom_call.1} parent=1 // pred_check_branch
      %26 = sbr.rel (0) target = $region9
    $region8: #{tpu_custom_call.1} parent=1 // pred_region
      %s28 = ssub.s32 2048, 2048
      %29 = vsyncadd [#allocation5], %s28
      %s30 = sshll.u32 [#allocation4], 4
      %s31 = int_to_ptr.vmem [resolvable:$true] %s30
      %36 = dma.hbm_to_vmem [thread:$0]  %s1, 2048, %s31, [#allocation5], 128, 128, 8
    $region9: #{tpu_custom_call.1} parent=1 // pred_fallthru
      _
    // Predicated region
    $region10: #{tpu_custom_call.1} parent=1 // pred_check
      _
    $region11: #{tpu_custom_call.1} parent=1 // pred_check_branch
      %38 = sbr.rel (0) target = $region13
    $region12: #{tpu_custom_call.1} parent=1 // pred_region
      _
    $region13: #{tpu_custom_call.1} parent=1 // pred_fallthru
      _
    // Predicated region
    $region14: #{tpu_custom_call.1} parent=1 // pred_check
      _
    $region15: #{tpu_custom_call.1} parent=1 // pred_check_branch
      %40 = sbr.rel (0) target = $region17
    $region16: #{tpu_custom_call.1} parent=1 // pred_region
      %s42 = ssub.s32 2048, 2048
      %43 = vsyncadd [#allocation5], %s42
      %s44 = sshll.u32 [#allocation6], 4
      %s45 = int_to_ptr.vmem [resolvable:$true] %s44
      %50 = dma.hbm_to_vmem [thread:$0]  %s3, 2048, %s45, [#allocation5], 128, 128, 8
    $region17: #{tpu_custom_call.1} parent=1 // pred_fallthru
      _
    // Predicated region
    $region18: #{tpu_custom_call.1} parent=1 // pred_check
      _
    $region19: #{tpu_custom_call.1} parent=1 // pred_check_branch
      %52 = sbr.rel (0) target = $region21
    $region20: #{tpu_custom_call.1} parent=1 // pred_region
      _
    $region21: #{tpu_custom_call.1} parent=1 // pred_fallthru
      _
    // Predicated region
    $region22: #{tpu_custom_call.1} parent=1 // pred_check
      _
    $region23: #{tpu_custom_call.1} parent=1 // pred_check_branch
      %54 = sbr.rel (0) target = $region25
    $region24: #{tpu_custom_call.1} parent=1 // pred_region
      %s56 = ssub.s32 2048, 2048
      %57 = vsyncadd [#allocation8], %s56
      %s58 = sshll.u32 [#allocation7], 4
      %s59 = int_to_ptr.vmem [resolvable:$true] %s58
      %64 = dma.hbm_to_vmem [thread:$0]  %s5, 2048, %s59, [#allocation8], 128, 128, 8
    $region25: #{tpu_custom_call.1} parent=1 // pred_fallthru
      _
    // Predicated region
    $region26: #{tpu_custom_call.1} parent=1 // pred_check
      _
    $region27: #{tpu_custom_call.1} parent=1 // pred_check_branch
      %66 = sbr.rel (0) target = $region29
    $region28: #{tpu_custom_call.1} parent=1 // pred_region
      _
    $region29: #{tpu_custom_call.1} parent=1 // pred_fallthru
      _
    // Predicated region
    $region30: #{tpu_custom_call.1} parent=1 // pred_check
      _
    $region31: #{tpu_custom_call.1} parent=1 // pred_check_branch
      %68 = sbr.rel (0) target = $region33
    $region32: #{tpu_custom_call.1} parent=1 // pred_region
      %69 = dma.done [#allocation3], 128
    $region33: #{tpu_custom_call.1} parent=1 // pred_fallthru
      _
    // Predicated region
    $region34: #{tpu_custom_call.1} parent=1 // pred_check
      _
    $region35: #{tpu_custom_call.1} parent=1 // pred_check_branch
      %71 = sbr.rel (0) target = $region37
    $region36: #{tpu_custom_call.1} parent=1 // pred_region
      %72 = dma.done [#allocation5], 2048
    $region37: #{tpu_custom_call.1} parent=1 // pred_fallthru
      _
    // Predicated region
    $region38: #{tpu_custom_call.1} parent=1 // pred_check
      _
    $region39: #{tpu_custom_call.1} parent=1 // pred_check_branch
      %74 = sbr.rel (0) target = $region41
    $region40: #{tpu_custom_call.1} parent=1 // pred_region
      %75 = dma.done [#allocation5], 2048
    $region41: #{tpu_custom_call.1} parent=1 // pred_fallthru
      _
    // Predicated region
    $region42: #{tpu_custom_call.1} parent=1 // pred_check
      _
    $region43: #{tpu_custom_call.1} parent=1 // pred_check_branch
      %77 = sbr.rel (0) target = $region45
    $region44: #{tpu_custom_call.1} parent=1 // pred_region
      %78 = dma.done [#allocation8], 2048
    $region45: #{tpu_custom_call.1} parent=1 // pred_fallthru
      _
    %v79 = vld [vmem:[#allocation2] sm:$0xff]
    %v80 = vld [vmem:[#allocation4] sm:$0xff]
    %v81 = vld [vmem:[#allocation4 + $0x8] sm:$0xff]
    %v82 = vld [vmem:[#allocation4 + $0x10] sm:$0xff]
    %v83 = vld [vmem:[#allocation4 + $0x18] sm:$0xff]
    %v84 = vld [vmem:[#allocation4 + $0x20] sm:$0xff]
    %v85 = vld [vmem:[#allocation4 + $0x28] sm:$0xff]
    %v86 = vld [vmem:[#allocation4 + $0x30] sm:$0xff]
    %v87 = vld [vmem:[#allocation4 + $0x38] sm:$0xff]
    %v88 = vld [vmem:[#allocation4 + $0x40] sm:$0xff]
    %v89 = vld [vmem:[#allocation4 + $0x48] sm:$0xff]
    %v90 = vld [vmem:[#allocation4 + $0x50] sm:$0xff]
    %v91 = vld [vmem:[#allocation4 + $0x58] sm:$0xff]
    %v92 = vld [vmem:[#allocation4 + $0x60] sm:$0xff]
    %v93 = vld [vmem:[#allocation4 + $0x68] sm:$0xff]
    %v94 = vld [vmem:[#allocation4 + $0x70] sm:$0xff]
    %v95 = vld [vmem:[#allocation4 + $0x78] sm:$0xff]
    %v96 = vld [vmem:[%s2] sm:$0x1]
    %v98 = vlaneseq
    %v99 = vshrl.u32 %v98, 7
    %v100 = vsub.s32 0, %v99
    %v101 = vrot.slane %v96, %v100
    %103 = vmatprep.subr.mxu0 0.0
    %104 = vmatpush1.msra.mxu0 %v80
    %105 = vmatprep.subr.mxu0 0.0
    %106 = vmatpush1.msra.mxu0 %v81
    %107 = vmatprep.subr.mxu0 0.0
    %108 = vmatpush1.msra.mxu0 %v82
    %109 = vmatprep.subr.mxu0 0.0
    %110 = vmatpush1.msra.mxu0 %v83
    %111 = vmatprep.subr.mxu0 0.0
    %112 = vmatpush1.msra.mxu0 %v84
    %113 = vmatprep.subr.mxu0 0.0
    %114 = vmatpush1.msra.mxu0 %v85
    %115 = vmatprep.subr.mxu0 0.0
    %116 = vmatpush1.msra.mxu0 %v86
    %117 = vmatprep.subr.mxu0 0.0
    %118 = vmatpush1.msra.mxu0 %v87
    %119 = vmatprep.subr.mxu0 0.0
    %120 = vmatpush1.msra.mxu0 %v88
    %121 = vmatprep.subr.mxu0 0.0
    %122 = vmatpush1.msra.mxu0 %v89
    %123 = vmatprep.subr.mxu0 0.0
    %124 = vmatpush1.msra.mxu0 %v90
    %125 = vmatprep.subr.mxu0 0.0
    %126 = vmatpush1.msra.mxu0 %v91
    %127 = vmatprep.subr.mxu0 0.0
    %128 = vmatpush1.msra.mxu0 %v92
    %129 = vmatprep.subr.mxu0 0.0
    %130 = vmatpush1.msra.mxu0 %v93
    %131 = vmatprep.subr.mxu0 0.0
    %132 = vmatpush1.msra.mxu0 %v94
    %133 = vmatprep.subr.mxu0 0.0
    %134 = vmatpush1.msra.mxu0 %v95
    %135 = vmatprep.subr.mxu0 0.0
    %136 = vmatpush1.msra.mxu0 0.0
    %137 = vmatprep.subr.mxu0 0.0
    %138 = vmatpush1.msra.mxu0 0.0
    %139 = vmatprep.subr.mxu0 0.0
    %140 = vmatpush1.msra.mxu0 0.0
    %141 = vmatprep.subr.mxu0 0.0
    %142 = vmatpush1.msra.mxu0 0.0
    %143 = vmatprep.subr.mxu0 0.0
    %144 = vmatpush1.msra.mxu0 0.0
    %145 = vmatprep.subr.mxu0 0.0
    %146 = vmatpush1.msra.mxu0 0.0
    %147 = vmatprep.subr.mxu0 0.0
    %148 = vmatpush1.msra.mxu0 0.0
    %149 = vmatprep.subr.mxu0 0.0
    %150 = vmatpush1.msra.mxu0 0.0
    %151 = vmatprep.subr.mxu0 0.0
    %152 = vmatpush1.msra.mxu0 0.0
    %153 = vmatprep.subr.mxu0 0.0
    %154 = vmatpush1.msra.mxu0 0.0
    %155 = vmatprep.subr.mxu0 0.0
    %156 = vmatpush1.msra.mxu0 0.0
    %157 = vmatprep.subr.mxu0 0.0
    %158 = vmatpush1.msra.mxu0 0.0
    %159 = vmatprep.subr.mxu0 0.0
    %160 = vmatpush1.msra.mxu0 0.0
    %161 = vmatprep.subr.mxu0 0.0
    %162 = vmatpush1.msra.mxu0 0.0
    %163 = vmatprep.subr.mxu0 0.0
    %164 = vmatpush1.msra.mxu0 0.0
    %165 = vmatprep.subr.mxu0 0.0
    %166 = vmatpush1.msra.mxu0 0.0
    %167 = vmatprep.mubr.f32.mxu0 0.0
    %168 = vmatmul.mubr.f32.gmra.mrb[0].mxu0 %v79
    %v169 = vpop.f32.mrb[0].mxu0
    %v170 = vadd.f32 %v101, %v169
    %v171 = vpop.f32.mrb[0].mxu0
    %172 = vdwg.mxu0
    %v173 = vmax.f32 %v170, 0.0
    %v174 = vld [vmem:[#allocation6] sm:$0xff]
    %v175 = vld [vmem:[#allocation6 + $0x8] sm:$0xff]
    %v176 = vld [vmem:[#allocation6 + $0x10] sm:$0xff]
    %v177 = vld [vmem:[#allocation6 + $0x18] sm:$0xff]
    %v178 = vld [vmem:[#allocation6 + $0x20] sm:$0xff]
    %v179 = vld [vmem:[#allocation6 + $0x28] sm:$0xff]
    %v180 = vld [vmem:[#allocation6 + $0x30] sm:$0xff]
    %v181 = vld [vmem:[#allocation6 + $0x38] sm:$0xff]
    %v182 = vld [vmem:[#allocation6 + $0x40] sm:$0xff]
    %v183 = vld [vmem:[#allocation6 + $0x48] sm:$0xff]
    %v184 = vld [vmem:[#allocation6 + $0x50] sm:$0xff]
    %v185 = vld [vmem:[#allocation6 + $0x58] sm:$0xff]
    %v186 = vld [vmem:[#allocation6 + $0x60] sm:$0xff]
    %v187 = vld [vmem:[#allocation6 + $0x68] sm:$0xff]
    %v188 = vld [vmem:[#allocation6 + $0x70] sm:$0xff]
    %v189 = vld [vmem:[#allocation6 + $0x78] sm:$0xff]
    %v190 = vld [vmem:[%s4] sm:$0x1]
    %v192 = vlaneseq
    %v193 = vshrl.u32 %v192, 7
    %v194 = vsub.s32 0, %v193
    %v195 = vrot.slane %v190, %v194
    %197 = vmatprep.subr.mxu0 0.0
    %198 = vmatpush1.msra.mxu0 %v174
    %199 = vmatprep.subr.mxu0 0.0
    %200 = vmatpush1.msra.mxu0 %v175
    %201 = vmatprep.subr.mxu0 0.0
    %202 = vmatpush1.msra.mxu0 %v176
    %203 = vmatprep.subr.mxu0 0.0
    %204 = vmatpush1.msra.mxu0 %v177
    %205 = vmatprep.subr.mxu0 0.0
    %206 = vmatpush1.msra.mxu0 %v178
    %207 = vmatprep.subr.mxu0 0.0
    %208 = vmatpush1.msra.mxu0 %v179
    %209 = vmatprep.subr.mxu0 0.0
    %210 = vmatpush1.msra.mxu0 %v180
    %211 = vmatprep.subr.mxu0 0.0
    %212 = vmatpush1.msra.mxu0 %v181
    %213 = vmatprep.subr.mxu0 0.0
    %214 = vmatpush1.msra.mxu0 %v182
    %215 = vmatprep.subr.mxu0 0.0
    %216 = vmatpush1.msra.mxu0 %v183
    %217 = vmatprep.subr.mxu0 0.0
    %218 = vmatpush1.msra.mxu0 %v184
    %219 = vmatprep.subr.mxu0 0.0
    %220 = vmatpush1.msra.mxu0 %v185
    %221 = vmatprep.subr.mxu0 0.0
    %222 = vmatpush1.msra.mxu0 %v186
    %223 = vmatprep.subr.mxu0 0.0
    %224 = vmatpush1.msra.mxu0 %v187
    %225 = vmatprep.subr.mxu0 0.0
    %226 = vmatpush1.msra.mxu0 %v188
    %227 = vmatprep.subr.mxu0 0.0
    %228 = vmatpush1.msra.mxu0 %v189
    %229 = vmatprep.subr.mxu0 0.0
    %230 = vmatpush1.msra.mxu0 0.0
    %231 = vmatprep.subr.mxu0 0.0
    %232 = vmatpush1.msra.mxu0 0.0
    %233 = vmatprep.subr.mxu0 0.0
    %234 = vmatpush1.msra.mxu0 0.0
    %235 = vmatprep.subr.mxu0 0.0
    %236 = vmatpush1.msra.mxu0 0.0
    %237 = vmatprep.subr.mxu0 0.0
    %238 = vmatpush1.msra.mxu0 0.0
    %239 = vmatprep.subr.mxu0 0.0
    %240 = vmatpush1.msra.mxu0 0.0
    %241 = vmatprep.subr.mxu0 0.0
    %242 = vmatpush1.msra.mxu0 0.0
    %243 = vmatprep.subr.mxu0 0.0
    %244 = vmatpush1.msra.mxu0 0.0
    %245 = vmatprep.subr.mxu0 0.0
    %246 = vmatpush1.msra.mxu0 0.0
    %247 = vmatprep.subr.mxu0 0.0
    %248 = vmatpush1.msra.mxu0 0.0
    %249 = vmatprep.subr.mxu0 0.0
    %250 = vmatpush1.msra.mxu0 0.0
    %251 = vmatprep.subr.mxu0 0.0
    %252 = vmatpush1.msra.mxu0 0.0
    %253 = vmatprep.subr.mxu0 0.0
    %254 = vmatpush1.msra.mxu0 0.0
    %255 = vmatprep.subr.mxu0 0.0
    %256 = vmatpush1.msra.mxu0 0.0
    %257 = vmatprep.subr.mxu0 0.0
    %258 = vmatpush1.msra.mxu0 0.0
    %259 = vmatprep.subr.mxu0 0.0
    %260 = vmatpush1.msra.mxu0 0.0
    %261 = vmatprep.mubr.f32.mxu0 0.0
    %262 = vmatmul.mubr.f32.gmra.mrb[0].mxu0 %v173
    %v263 = vpop.f32.mrb[0].mxu0
    %v264 = vadd.f32 %v195, %v263
    %v265 = vpop.f32.mrb[0].mxu0
    %266 = vdwg.mxu0
    %v267 = vmax.f32 %v264, 0.0
    %v268 = vld [vmem:[#allocation7] sm:$0xff]
    %v269 = vld [vmem:[#allocation7 + $0x8] sm:$0xff]
    %v270 = vld [vmem:[#allocation7 + $0x10] sm:$0xff]
    %v271 = vld [vmem:[#allocation7 + $0x18] sm:$0xff]
    %v272 = vld [vmem:[#allocation7 + $0x20] sm:$0xff]
    %v273 = vld [vmem:[#allocation7 + $0x28] sm:$0xff]
    %v274 = vld [vmem:[#allocation7 + $0x30] sm:$0xff]
    %v275 = vld [vmem:[#allocation7 + $0x38] sm:$0xff]
    %v276 = vld [vmem:[#allocation7 + $0x40] sm:$0xff]
    %v277 = vld [vmem:[#allocation7 + $0x48] sm:$0xff]
    %v278 = vld [vmem:[#allocation7 + $0x50] sm:$0xff]
    %v279 = vld [vmem:[#allocation7 + $0x58] sm:$0xff]
    %v280 = vld [vmem:[#allocation7 + $0x60] sm:$0xff]
    %v281 = vld [vmem:[#allocation7 + $0x68] sm:$0xff]
    %v282 = vld [vmem:[#allocation7 + $0x70] sm:$0xff]
    %v283 = vld [vmem:[#allocation7 + $0x78] sm:$0xff]
    %v284 = vld [vmem:[%s6] sm:$0x1]
    %v286 = vlaneseq
    %v287 = vshrl.u32 %v286, 7
    %v288 = vsub.s32 0, %v287
    %v289 = vrot.slane %v284, %v288
    %291 = vmatprep.subr.mxu0 0.0
    %292 = vmatpush1.msra.mxu0 %v268
    %293 = vmatprep.subr.mxu0 0.0
    %294 = vmatpush1.msra.mxu0 %v269
    %295 = vmatprep.subr.mxu0 0.0
    %296 = vmatpush1.msra.mxu0 %v270
    %297 = vmatprep.subr.mxu0 0.0
    %298 = vmatpush1.msra.mxu0 %v271
    %299 = vmatprep.subr.mxu0 0.0
    %300 = vmatpush1.msra.mxu0 %v272
    %301 = vmatprep.subr.mxu0 0.0
    %302 = vmatpush1.msra.mxu0 %v273
    %303 = vmatprep.subr.mxu0 0.0
    %304 = vmatpush1.msra.mxu0 %v274
    %305 = vmatprep.subr.mxu0 0.0
    %306 = vmatpush1.msra.mxu0 %v275
    %307 = vmatprep.subr.mxu0 0.0
    %308 = vmatpush1.msra.mxu0 %v276
    %309 = vmatprep.subr.mxu0 0.0
    %310 = vmatpush1.msra.mxu0 %v277
    %311 = vmatprep.subr.mxu0 0.0
    %312 = vmatpush1.msra.mxu0 %v278
    %313 = vmatprep.subr.mxu0 0.0
    %314 = vmatpush1.msra.mxu0 %v279
    %315 = vmatprep.subr.mxu0 0.0
    %316 = vmatpush1.msra.mxu0 %v280
    %317 = vmatprep.subr.mxu0 0.0
    %318 = vmatpush1.msra.mxu0 %v281
    %319 = vmatprep.subr.mxu0 0.0
    %320 = vmatpush1.msra.mxu0 %v282
    %321 = vmatprep.subr.mxu0 0.0
    %322 = vmatpush1.msra.mxu0 %v283
    %323 = vmatprep.subr.mxu0 0.0
    %324 = vmatpush1.msra.mxu0 0.0
    %325 = vmatprep.subr.mxu0 0.0
    %326 = vmatpush1.msra.mxu0 0.0
    %327 = vmatprep.subr.mxu0 0.0
    %328 = vmatpush1.msra.mxu0 0.0
    %329 = vmatprep.subr.mxu0 0.0
    %330 = vmatpush1.msra.mxu0 0.0
    %331 = vmatprep.subr.mxu0 0.0
    %332 = vmatpush1.msra.mxu0 0.0
    %333 = vmatprep.subr.mxu0 0.0
    %334 = vmatpush1.msra.mxu0 0.0
    %335 = vmatprep.subr.mxu0 0.0
    %336 = vmatpush1.msra.mxu0 0.0
    %337 = vmatprep.subr.mxu0 0.0
    %338 = vmatpush1.msra.mxu0 0.0
    %339 = vmatprep.subr.mxu0 0.0
    %340 = vmatpush1.msra.mxu0 0.0
    %341 = vmatprep.subr.mxu0 0.0
    %342 = vmatpush1.msra.mxu0 0.0
    %343 = vmatprep.subr.mxu0 0.0
    %344 = vmatpush1.msra.mxu0 0.0
    %345 = vmatprep.subr.mxu0 0.0
    %346 = vmatpush1.msra.mxu0 0.0
    %347 = vmatprep.subr.mxu0 0.0
    %348 = vmatpush1.msra.mxu0 0.0
    %349 = vmatprep.subr.mxu0 0.0
    %350 = vmatpush1.msra.mxu0 0.0
    %351 = vmatprep.subr.mxu0 0.0
    %352 = vmatpush1.msra.mxu0 0.0
    %353 = vmatprep.subr.mxu0 0.0
    %354 = vmatpush1.msra.mxu0 0.0
    %355 = vmatprep.mubr.f32.mxu0 0.0
    %356 = vmatmul.mubr.f32.gmra.mrb[0].mxu0 %v267
    %v357 = vpop.f32.mrb[0].mxu0
    %v358 = vadd.f32 %v289, %v357
    %v359 = vpop.f32.mrb[0].mxu0
    %360 = vdwg.mxu0
    %vm361 = vcmask 7168
    %362 = vst.msk [vmem:[%s7] sm:$0xff] %vm361, %v358
    // Predicated region
    $region46: #{tpu_custom_call.1} parent=1 // pred_check
      _
    $region47: #{tpu_custom_call.1} parent=1 // pred_check_branch
      %364 = sbr.rel (0) target = $region49
    $region48: #{tpu_custom_call.1} parent=1 // pred_region
      _
    $region49: #{tpu_custom_call.1} parent=1 // pred_fallthru
      _
    // Predicated region
    $region50: #{tpu_custom_call.1} parent=1 // pred_check
      _
    $region51: #{tpu_custom_call.1} parent=1 // pred_check_branch
      %366 = sbr.rel (0) target = $region53
    $region52: #{tpu_custom_call.1} parent=1 // pred_region
      _
    $region53: #{tpu_custom_call.1} parent=1 // pred_fallthru
      _
    %367 = vsyncpa [#allocation3], 1
    %368 = vsyncpa [#allocation5], 1
    %369 = vsyncpa [#allocation8], 1

</llo_original>
